<compile_context>
chip_gen: v7x
topology: tpu7x:2x2x1
jax: 0.10.0
libtpu: 0.0.40
codegen_flags: <defaults>
</compile_context>

<pallas_src>
import functools

import jax
import jax.numpy as jnp
from jax.experimental import pallas as pl
from jax.experimental.pallas import tpu as pltpu


def _round_up(x: int, m: int) -> int:
    return ((x + m - 1) // m) * m


def _sublane_pack(*dtypes) -> int:
    """Rows per packed sublane tile for the narrowest input dtype."""
    return max(8, max(32 // jnp.dtype(d).itemsize for d in dtypes))


# Total in-kernel VMEM budget used to size the batch tile (all chips; < half of
# v7x's 64 MiB physical VMEM, < v6e/v5e defaults once vmem_limit is raised).
_VMEM_BUDGET_BYTES = 32 * 1024 * 1024
# Generous estimate of simultaneously-live (tb, C) f32 temporaries in the body.
_INTERMEDIATE_MULT = 8
_MAX_BLOCK_ROWS = 8192
_HEADROOM_BYTES = 2 * 1024 * 1024


def _per_row_vmem_bytes(C: int, s_item: int, t_item: int) -> int:
    # 2 pipeline buffers per input + f32 intermediates, per batch row.
    return C * (2 * (s_item + t_item) + 4 * _INTERMEDIATE_MULT)


def _choose_block_rows(B: int, C: int, s_item: int, t_item: int, pack: int) -> int:
    """Largest batch tile (multiple of the sublane pack) that fits the budget."""
    if B <= pack:
        return B  # full second-to-last dim is always a legal block size
    per_row = _per_row_vmem_bytes(C, s_item, t_item)
    rows = (_VMEM_BUDGET_BYTES - _HEADROOM_BYTES) // max(1, per_row)
    rows = min(rows, _MAX_BLOCK_ROWS, _round_up(B, pack))
    rows = max(rows, pack)
    return _round_up(rows, pack)


def _kd_kernel(ys_ref, yt_ref, temp_ref, out_ref, *,
               normal: bool, batch_size: int, block_rows: int, mask_rows: bool):
    ys = ys_ref[...].astype(jnp.float32)
    yt = yt_ref[...].astype(jnp.float32)
    TB, C = ys.shape

    T = temp_ref[0]
    inv_T = 1.0 / T  # single scalar reciprocal instead of full-array divides

    if normal:
        # normalize(): per-row mean / std (torch.std -> unbiased, /(C-1)).
        # One-pass sum / sum-of-squares (2 lane reductions per input instead of
        # 3).  Clamped at 0 so cancellation can't NaN; slight drift vs. the
        # two-pass torch.std is possible for badly-conditioned logits.
        inv_C = 1.0 / C
        inv_Cm1 = 1.0 / (C - 1)

        def _norm(x):
            s = jnp.sum(x, axis=-1, keepdims=True)
            ss = jnp.sum(x * x, axis=-1, keepdims=True)
            mean = s * inv_C
            var = jnp.maximum(ss - s * mean, 0.0) * inv_Cm1
            std = jnp.sqrt(var)
            return (x - mean) * (1.0 / (1e-7 + std))  # one divide per row

        ys = _norm(ys)
        yt = _norm(yt)

    zs = ys * inv_T
    zt = yt * inv_T

    # Student log_softmax over the class axis (numerically stable).
    zs_shift = zs - jnp.max(zs, axis=-1, keepdims=True)
    sum_s = jnp.sum(jnp.exp(zs_shift), axis=-1, keepdims=True)
    log_ps = zs_shift - jnp.log(sum_s)

    # Teacher softmax + log_softmax (reuse shift / sum).
    zt_shift = zt - jnp.max(zt, axis=-1, keepdims=True)
    exp_t = jnp.exp(zt_shift)
    sum_t = jnp.sum(exp_t, axis=-1, keepdims=True)
    log_pt = zt_shift - jnp.log(sum_t)
    pt = exp_t * pl.reciprocal(sum_t, approx=True)  # EUP slot, per-row only

    # Per-row KL contribution; mask only rows past the true batch, and only
    # when the last tile is actually partial (static decision).
    row_kl = jnp.sum(pt * (log_pt - log_ps), axis=-1, keepdims=True)
    if mask_rows:
        i = pl.program_id(0)
        row_ids = i * block_rows + jax.lax.broadcasted_iota(jnp.int32, (TB, 1), 0)
        row_kl = jnp.where(row_ids < batch_size, row_kl, 0.0)

    partial = jnp.sum(row_kl)

    # Private per-tile output block (lane-dense, unmasked store) -> the grid
    # axis has no cross-iteration dependency and can be "parallel" (megacore).
    out_ref[...] = jnp.full(out_ref.shape, partial, dtype=out_ref.dtype)


def distill_kl_logit_stand(y_s, y_t, temp, normal=False, block_rows=None):
    """Pallas equivalent of DistillKL_logit_stand.forward. Returns scalar f32.

    Callers are encouraged to pass bf16 logits (cast at the producing matmul):
    the kernel upcasts to f32 internally and HBM traffic halves.
    """
    y_s = jnp.asarray(y_s)
    y_t = jnp.asarray(y_t)
    assert y_s.ndim == 2 and y_s.shape == y_t.shape, "expected [B, C] logits"
    B, C = y_s.shape
    temp_f32 = jnp.asarray(temp, dtype=jnp.float32)
    temp_arr = temp_f32.reshape((1,))

    s_item = y_s.dtype.itemsize
    t_item = y_t.dtype.itemsize
    pack = _sublane_pack(y_s.dtype, y_t.dtype)

    if block_rows is None:
        tb = _choose_block_rows(B, C, s_item, t_item, pack)
    elif B <= pack:
        tb = B
    else:
        tb = _round_up(max(pack, min(block_rows, _round_up(B, pack))), pack)

    num_tiles = pl.cdiv(B, tb)
    mask_rows = (B % tb) != 0

    # Shape-derived scoped-VMEM request: double-buffered inputs + f32 temps.
    in_tile_bytes = tb * C * (s_item + t_item)
    tile_f32_bytes = tb * C * 4
    vmem_needed = 2 * in_tile_bytes + _INTERMEDIATE_MULT * tile_f32_bytes + _HEADROOM_BYTES
    vmem_limit = int(min(max(vmem_needed, 16 * 1024 * 1024), 100 * 1024 * 1024))

    kernel = functools.partial(
        _kd_kernel, normal=bool(normal), batch_size=B,
        block_rows=tb, mask_rows=mask_rows,
    )

    # Advisory cost: 2 logits arrays streamed, ~3 transcendentals per element.
    cost = pl.CostEstimate(
        flops=30 * B * C,
        transcendentals=3 * B * C,
        bytes_accessed=B * C * (s_item + t_item) + num_tiles * 8 * 128 * 4 + 8,
    )

    partials = pl.pallas_call(
        kernel,
        out_shape=jax.ShapeDtypeStruct((num_tiles, 8, 128), jnp.float32),
        grid=(num_tiles,),
        in_specs=[
            pl.BlockSpec((tb, C), lambda i: (i, 0)),      # y_s tile (VMEM, pipelined)
            pl.BlockSpec((tb, C), lambda i: (i, 0)),      # y_t tile (VMEM, pipelined)
            pl.BlockSpec(memory_space=pltpu.SMEM),        # temp scalar (resident)
        ],
        out_specs=pl.BlockSpec((1, 8, 128), lambda i: (i, 0, 0)),  # per-tile partial
        compiler_params=pltpu.CompilerParams(
            dimension_semantics=("parallel",),            # megacore-splittable on v7x
            vmem_limit_bytes=vmem_limit,
        ),
        cost_estimate=cost,
    )(y_s, y_t, temp_arr)

    # Final reduction + global scaling (exactly once) in the wrapper.
    return jnp.sum(partials[:, 0, 0]) * temp_f32 * temp_f32 / B


def _reference(y_s, y_t, temp, normal=False):
    """Pure-JAX reference for validation (mirrors the PyTorch forward)."""
    y_s = jnp.asarray(y_s, jnp.float32)
    y_t = jnp.asarray(y_t, jnp.float32)
    T = jnp.float32(temp)
    C = y_s.shape[-1]
    if normal:
        def _norm(x):
            mean = jnp.mean(x, axis=-1, keepdims=True)
            std = jnp.sqrt(jnp.sum((x - mean) ** 2, axis=-1, keepdims=True) / (C - 1))
            return (x - mean) / (1e-7 + std)
        y_s, y_t = _norm(y_s), _norm(y_t)
    log_ps = jax.nn.log_softmax(y_s / T, axis=1)
    pt = jax.nn.softmax(y_t / T, axis=1)
    log_pt = jax.nn.log_softmax(y_t / T, axis=1)
    return jnp.sum(pt * (log_pt - log_ps)) / y_s.shape[0] * T * T


if __name__ == "__main__":
    key = jax.random.PRNGKey(0)
    temp = 4.0
    ok = True

    cases = [
        # (B, C, block_rows_override, dtype)
        (8, 128, None, jnp.float32),    # single tile, auto block size
        (48, 128, 16, jnp.float32),     # multiple tiles -> parallel partials
        (20, 96, 16, jnp.float32),      # partial last tile + C not mult of 128
        (64, 128, None, jnp.bfloat16),  # bf16 inputs (sublane pack = 16)
    ]

    for idx, (B, C, br, dt) in enumerate(cases):
        k1, k2 = jax.random.split(jax.random.fold_in(key, idx))
        y_s = (jax.random.normal(k1, (B, C), dtype=jnp.float32) * 2.0).astype(dt)
        y_t = (jax.random.normal(k2, (B, C), dtype=jnp.float32) * 2.0).astype(dt)
        for normal in (False, True):
            loss = distill_kl_logit_stand(y_s, y_t, temp, normal=normal, block_rows=br)
            loss = jax.block_until_ready(loss)
            ref = _reference(y_s, y_t, temp, normal=normal)
            # rtol covers the EUP approx-reciprocal in the teacher softmax denom
            # (pure per-row scale on the KL term) plus f32 reduction-order noise.
            if not jnp.allclose(loss, ref, rtol=5e-3, atol=1e-4):
                ok = False
                print(f"mismatch B={B} C={C} block_rows={br} dtype={dt} "
                      f"normal={normal}: kernel={loss} ref={ref}")

    if ok:
        print("KERNEL_OK")
</pallas_src>

<mosaic_0001>
module attributes {stable_mosaic.version = 11 : i64} {
  func.func @_kd_kernel(%arg0: i32, %arg1: memref<8x128xf32, #tpu.memory_space<vmem>>, %arg2: memref<8x128xf32, #tpu.memory_space<vmem>>, %arg3: memref<1xf32, #tpu.memory_space<smem>>, %arg4: memref<1x8x128xf32, #tpu.memory_space<vmem>>) attributes {dimension_semantics = [#tpu.dimension_semantics<parallel>], iteration_bounds = array<i64: 1>, scalar_prefetch = 0 : i64, scratch_operands = 0 : i64, tpu.core_type = #tpu.core_type<tc>, window_params = [{transform_indices = @transform_0, window_bounds = array<i64: 8, 128>}, {transform_indices = @transform_1, window_bounds = array<i64: 8, 128>}, {transform_indices = @transform_2, window_bounds = array<i64: 1>}, {transform_indices = @transform_3, window_bounds = array<i64: 1, 8, 128>}]} {
    %c0 = arith.constant 0 : index
    %c0_0 = arith.constant 0 : index
    %0 = vector.load %arg1[%c0, %c0_0] : memref<8x128xf32, #tpu.memory_space<vmem>>, vector<8x128xf32>
    %c0_1 = arith.constant 0 : index
    %c0_2 = arith.constant 0 : index
    %1 = vector.load %arg2[%c0_1, %c0_2] : memref<8x128xf32, #tpu.memory_space<vmem>>, vector<8x128xf32>
    %c0_3 = arith.constant 0 : index
    %2 = memref.load %arg3[%c0_3] : memref<1xf32, #tpu.memory_space<smem>>
    %cst = arith.constant 1.000000e+00 : f32
    %3 = arith.divf %cst, %2 : f32
    %4 = vector.broadcast %3 : f32 to vector<8x128xf32>
    %5 = arith.mulf %0, %4 : vector<8x128xf32>
    %6 = vector.broadcast %3 : f32 to vector<8x128xf32>
    %7 = arith.mulf %1, %6 : vector<8x128xf32>
    %cst_4 = arith.constant dense<0xFF800000> : vector<8xf32>
    %8 = vector.multi_reduction <maximumf>, %5, %cst_4 [1] : vector<8x128xf32> to vector<8xf32>
    %9 = vector.shape_cast %8 : vector<8xf32> to vector<8x1xf32>
    %10 = vector.broadcast %9 : vector<8x1xf32> to vector<8x128xf32>
    %11 = arith.subf %5, %10 : vector<8x128xf32>
    %12 = math.exp %11 : vector<8x128xf32>
    %cst_5 = arith.constant dense<0.000000e+00> : vector<8xf32>
    %13 = vector.multi_reduction <add>, %12, %cst_5 [1] : vector<8x128xf32> to vector<8xf32>
    %14 = vector.shape_cast %13 : vector<8xf32> to vector<8x1xf32>
    %15 = math.log %14 : vector<8x1xf32>
    %16 = vector.broadcast %15 : vector<8x1xf32> to vector<8x128xf32>
    %17 = arith.subf %11, %16 : vector<8x128xf32>
    %cst_6 = arith.constant dense<0xFF800000> : vector<8xf32>
    %18 = vector.multi_reduction <maximumf>, %7, %cst_6 [1] : vector<8x128xf32> to vector<8xf32>
    %19 = vector.shape_cast %18 : vector<8xf32> to vector<8x1xf32>
    %20 = vector.broadcast %19 : vector<8x1xf32> to vector<8x128xf32>
    %21 = arith.subf %7, %20 : vector<8x128xf32>
    %22 = math.exp %21 : vector<8x128xf32>
    %cst_7 = arith.constant dense<0.000000e+00> : vector<8xf32>
    %23 = vector.multi_reduction <add>, %22, %cst_7 [1] : vector<8x128xf32> to vector<8xf32>
    %24 = vector.shape_cast %23 : vector<8xf32> to vector<8x1xf32>
    %25 = math.log %24 : vector<8x1xf32>
    %26 = vector.broadcast %25 : vector<8x1xf32> to vector<8x128xf32>
    %27 = arith.subf %21, %26 : vector<8x128xf32>
    %28 = tpu.reciprocal %24 {approx = true} : vector<8x1xf32> -> vector<8x1xf32>
    %29 = vector.broadcast %28 : vector<8x1xf32> to vector<8x128xf32>
    %30 = arith.mulf %22, %29 : vector<8x128xf32>
    %31 = arith.subf %27, %17 : vector<8x128xf32>
    %32 = arith.mulf %30, %31 : vector<8x128xf32>
    %cst_8 = arith.constant dense<0.000000e+00> : vector<8xf32>
    %33 = vector.multi_reduction <add>, %32, %cst_8 [1] : vector<8x128xf32> to vector<8xf32>
    %34 = vector.shape_cast %33 : vector<8xf32> to vector<8x1xf32>
    %35 = vector.shape_cast %34 : vector<8x1xf32> to vector<1x8x1xf32>
    %cst_9 = arith.constant dense<0.000000e+00> : vector<1xf32>
    %36 = vector.multi_reduction <add>, %35, %cst_9 [1, 2] : vector<1x8x1xf32> to vector<1xf32>
    %37 = vector.shape_cast %36 : vector<1xf32> to vector<1x1x1xf32>
    %38 = vector.extract %37[0, 0, 0] : f32 from vector<1x1x1xf32>
    %39 = vector.broadcast %38 : f32 to vector<1x8x128xf32>
    %c0_10 = arith.constant 0 : index
    %c0_11 = arith.constant 0 : index
    %c0_12 = arith.constant 0 : index
    %40 = vector.load %arg4[%c0_10, %c0_11, %c0_12] : memref<1x8x128xf32, #tpu.memory_space<vmem>>, vector<1x8x128xf32>
    tpu.vector_store %arg4[%c0_10, %c0_11, %c0_12], %39 {strides = array<i32>} : memref<1x8x128xf32, #tpu.memory_space<vmem>>, vector<1x8x128xf32>,
    return
  }
  func.func @transform_0(%arg0: i32) -> (i32, i32) {
    %c0_i32 = arith.constant 0 : i32
    %c0_i32_0 = arith.constant 0 : i32
    return %arg0, %c0_i32 : i32, i32
  }
  func.func @transform_1(%arg0: i32) -> (i32, i32) {
    %c0_i32 = arith.constant 0 : i32
    %c0_i32_0 = arith.constant 0 : i32
    return %arg0, %c0_i32 : i32, i32
  }
  func.func @transform_2(%arg0: i32) -> i32 {
    %c0_i32 = arith.constant 0 : i32
    %c0_i32_0 = arith.constant 0 : i32
    return %c0_i32 : i32
  }
  func.func @transform_3(%arg0: i32) -> (i32, i32, i32) {
    %c0_i32 = arith.constant 0 : i32
    %c0_i32_0 = arith.constant 0 : i32
    %c0_i32_1 = arith.constant 0 : i32
    return %arg0, %c0_i32, %c0_i32_0 : i32, i32, i32
  }
}

</mosaic_0001>

<llo_original>
// kernel: tpu_custom_call.1
$region0: #{tpu_custom_call.1}
  #allocation0 [shape = 'u32[]', space=smem, size = 0x4, offset = 0x4, fixed_abs, tag = 'smem constant byte address 0x4 - core index']
  #allocation1 [shape = 'u32[144,128]{1,0:T(1,128)}', space=vmem, size = 0x12000, scoped, tag = 'internal scratch']
  #allocation2 [shape = 'f32[1]{0:T(128)S(6)}', space=smem, size = 0x200, scoped, tag = 'scoped memory for tpu_custom_call.1']
  %s0 = inlined_call_operand.hbm [shape: f32[8,128], index: 0, kind: input, shape index: {}]
  %s1 = inlined_call_operand.hbm [shape: f32[8,128], index: 1, kind: input, shape index: {}]
  %s2 = inlined_call_operand.<no memory space> [shape: f32[1], index: 2, kind: input, shape index: {}]
  %s3 = inlined_call_operand.hbm [shape: f32[1,8,128], index: 3, kind: output, shape index: {}]
  %s4 = sld [smem:[#allocation0]]
  $region30: #{tpu_custom_call.1} parent=0
    _
  %s6 = ssub.s32 1, %s4
  %s7 = scalar_select 0, %s6, %s4
  %8 = sst [smem:[#allocation2]] %s2
  $region1: #{tpu_custom_call.1} parent=0
    #allocation3 [shape = 'u8[4096]{0}', space=vmem, size = 0x1000, scoped, tag = 'input window, operand 0, single buffered']
    #allocation4 [shape = 's32[1]{0}', space=sflag, size = 0x4, scoped, tag = 'scoped memory for tpu_custom_call.1']
    #allocation5 [shape = 's32[1]{0}', space=sflag, size = 0x4, scoped, tag = 'scoped memory for tpu_custom_call.1']
    #allocation6 [shape = 'u8[4096]{0}', space=vmem, size = 0x1000, scoped, tag = 'input window, operand 1, single buffered']
    #allocation7 [shape = 's32[1]{0}', space=sflag, size = 0x4, scoped, tag = 'scoped memory for tpu_custom_call.1']
    #allocation8 [shape = 'u8[4096]{0}', space=vmem, size = 0x1000, scoped, tag = 'output window, operand 0, single buffered']
    %9 = vsyncpa [#allocation4], 0
    %10 = vsyncpa [#allocation7], 0
    %11 = vsyncpa [#allocation5], 0
    // Predicated region
    $region2: #{tpu_custom_call.1} parent=1 // pred_check
      _
    $region3: #{tpu_custom_call.1} parent=1 // pred_check_branch
      %13 = sbr.rel (0) target = $region5
    $region4: #{tpu_custom_call.1} parent=1 // pred_region
      %s15 = ssub.s32 128, 128
      %16 = vsyncadd [#allocation4], %s15
      %s18 = sshll.u32 [#allocation3], 4
      %s19 = int_to_ptr.vmem [resolvable:$true] %s18
      %21 = dma.hbm_to_vmem [thread:$0]  %s0, 128, %s19, [#allocation4]
    $region5: #{tpu_custom_call.1} parent=1 // pred_fallthru
      _
    // Predicated region
    $region6: #{tpu_custom_call.1} parent=1 // pred_check
      _
    $region7: #{tpu_custom_call.1} parent=1 // pred_check_branch
      %23 = sbr.rel (0) target = $region9
    $region8: #{tpu_custom_call.1} parent=1 // pred_region
      %s25 = ssub.s32 128, 128
      %26 = vsyncadd [#allocation7], %s25
      %s28 = sshll.u32 [#allocation6], 4
      %s29 = int_to_ptr.vmem [resolvable:$true] %s28
      %31 = dma.hbm_to_vmem [thread:$0]  %s1, 128, %s29, [#allocation7]
    $region9: #{tpu_custom_call.1} parent=1 // pred_fallthru
      _
    // Predicated region
    $region10: #{tpu_custom_call.1} parent=1 // pred_check
      _
    $region11: #{tpu_custom_call.1} parent=1 // pred_check_branch
      %33 = sbr.rel (0) target = $region13
    $region12: #{tpu_custom_call.1} parent=1 // pred_region
      _
    $region13: #{tpu_custom_call.1} parent=1 // pred_fallthru
      _
    // Predicated region
    $region14: #{tpu_custom_call.1} parent=1 // pred_check
      _
    $region15: #{tpu_custom_call.1} parent=1 // pred_check_branch
      %35 = sbr.rel (0) target = $region17
    $region16: #{tpu_custom_call.1} parent=1 // pred_region
      %36 = dma.done [#allocation4], 128
    $region17: #{tpu_custom_call.1} parent=1 // pred_fallthru
      _
    // Predicated region
    $region18: #{tpu_custom_call.1} parent=1 // pred_check
      _
    $region19: #{tpu_custom_call.1} parent=1 // pred_check_branch
      %38 = sbr.rel (0) target = $region21
    $region20: #{tpu_custom_call.1} parent=1 // pred_region
      %39 = dma.done [#allocation7], 128
    $region21: #{tpu_custom_call.1} parent=1 // pred_fallthru
      _
    %v40 = vld [vmem:[#allocation3] sm:$0xff]
    %v41 = vld [vmem:[#allocation6] sm:$0xff]
    %s42 = sld [smem:[#allocation2]]
    %v43 = vstv %s42
    %v44 = vrcp.pop %v43
    %s45 = vtos %v44
    %v46 = vstv %s45
    %v47 = vmul.f32 %v40, %v46
    %v48 = vmul.f32 %v41, %v46
    %49 = vmax.xlane.f32.xlu0 %v47
    %v50 = vpop.xlane.xlu0 %49
    %v51 = vsub.f32 %v47, %v50
    %v52 = vmul.f32 %v51, 1.442695
    %v53 = vpow.pop %v52
    %54 = vadd.xlane.f32.xlu0 %v53
    %v55 = vpop.xlane.xlu0 %54
    %v56 = vlog2.pop %v55
    %v57 = vmul.f32 %v56, 0.6931472
    %v58 = vsub.f32 %v51, %v57
    %59 = vmax.xlane.f32.xlu0 %v48
    %v60 = vpop.xlane.xlu0 %59
    %v61 = vsub.f32 %v48, %v60
    %v62 = vmul.f32 %v61, 1.442695
    %v63 = vpow.pop %v62
    %64 = vadd.xlane.f32.xlu0 %v63
    %v65 = vpop.xlane.xlu0 %64
    %v66 = vlog2.pop %v65
    %v67 = vmul.f32 %v66, 0.6931472
    %v68 = vsub.f32 %v61, %v67
    %v69 = vrcp.pop %v65
    %v70 = vmul.f32 %v63, %v69
    %v71 = vsub.f32 %v68, %v58
    %v72 = vmul.f32 %v70, %v71
    %73 = vadd.xlane.f32.xlu0 %v72
    %v74 = vpop.xlane.xlu0 %73
    %vm75 = vcmask 7168
    %v76 = vsel %vm75, %v74, 0.0
    %77 = vadd.xlane.f32.xlu0 %v76
    %v78 = vpop.xlane.xlu0 %77
    %v79 = vrot.slane %v78, 4
    %v80 = vadd.f32 %v78, %v79
    %v81 = vrot.slane %v80, 2
    %v82 = vadd.f32 %v80, %v81
    %v83 = vrot.slane %v82, 1
    %v84 = vadd.f32 %v82, %v83
    %s85 = vtos %v84
    %v86 = vstv %s85
    %87 = vst [vmem:[#allocation8] sm:$0xff] %v86
    // Predicated region
    $region22: #{tpu_custom_call.1} parent=1 // pred_check
      _
    $region23: #{tpu_custom_call.1} parent=1 // pred_check_branch
      %89 = sbr.rel (0) target = $region25
    $region24: #{tpu_custom_call.1} parent=1 // pred_region
      %s91 = ssub.s32 128, 128
      %92 = vsyncadd [#allocation5], %s91
      %s94 = sshll.u32 [#allocation8], 4
      %s95 = int_to_ptr.vmem [resolvable:$true] %s94
      %97 = dma.vmem_to_hbm [thread:$0]  %s95, 128, %s3, [#allocation5]
    $region25: #{tpu_custom_call.1} parent=1 // pred_fallthru
      _
    // Predicated region
    $region26: #{tpu_custom_call.1} parent=1 // pred_check
      _
    $region27: #{tpu_custom_call.1} parent=1 // pred_check_branch
      %99 = sbr.rel (0) target = $region29
    $region28: #{tpu_custom_call.1} parent=1 // pred_region
      %100 = dma.done [#allocation5], 128
    $region29: #{tpu_custom_call.1} parent=1 // pred_fallthru
      _
    %101 = vsyncpa [#allocation4], 1
    %102 = vsyncpa [#allocation7], 1
    %103 = vsyncpa [#allocation5], 1

</llo_original>
